<compile_context>
chip_gen: v5e
topology: v5e:2x2
jax: 0.10.0
libtpu: 0.0.40
codegen_flags: <defaults>
</compile_context>

<pallas_src>
import functools

import jax
import jax.numpy as jnp
from jax.experimental import pallas as pl
from jax.experimental.pallas import tpu as pltpu


def _triplet_loss_kernel(a_ref, p_ref, n_ref, loss_ref, acc_p_ref, acc_n_ref,
                         *, margin, feat, block_cols):
    k = pl.program_id(1)

    a = a_ref[...].astype(jnp.float32)
    p = p_ref[...].astype(jnp.float32)
    n = n_ref[...].astype(jnp.float32)

    dp = a - p
    dn = a - n

    # If the feature axis is tiled and D is not a multiple of the column tile,
    # mask out-of-range lanes in the edge block (garbage columns would leak
    # into the reduction). Static condition -> zero cost when not needed.
    if feat % block_cols != 0:
        col = jax.lax.broadcasted_iota(jnp.int32, dp.shape, 1)
        valid = (k * block_cols + col) < feat
        dp = jnp.where(valid, dp, 0.0)
        dn = jnp.where(valid, dn, 0.0)

    @pl.when(k == 0)
    def _():
        acc_p_ref[...] = jnp.zeros_like(acc_p_ref)
        acc_n_ref[...] = jnp.zeros_like(acc_n_ref)

    acc_p_ref[...] += jnp.sum(dp * dp, axis=1, keepdims=True)
    acc_n_ref[...] += jnp.sum(dn * dn, axis=1, keepdims=True)

    # Finalize: per-row L2 norms -> relu(d_pos - d_neg + margin).
    # No masking needed for a partial last *batch* block: the (B, 1) output
    # writeback is clipped by Pallas; invalid rows are never stored.
    @pl.when(k == pl.num_programs(1) - 1)
    def _():
        dpos = jnp.sqrt(acc_p_ref[...])
        dneg = jnp.sqrt(acc_n_ref[...])
        loss_ref[...] = jnp.maximum(dpos - dneg + margin, 0.0)


def _vmem_capacity_bytes():
    try:
        return int(pltpu.get_tpu_info().vmem_capacity_bytes)
    except Exception:
        # Conservative fallback (v7x-sized): 64 MiB per TensorCore.
        return 64 << 20


def _choose_tiles(batch, feat, itemsize, tile_rows=None, tile_cols=None):
    """Pick (tb, td) batch/feature tiles sized by bytes against a VMEM budget."""
    row_align = max(8, 32 // itemsize)        # 8 (f32), 16 (bf16), 32 (int8/fp8)
    vmem_cap = _vmem_capacity_bytes()
    # Half of per-TC VMEM for the 3 double-buffered inputs, capped at 48 MiB:
    #   v7x (64 MiB/TC) -> 32 MiB; v5e/v6e (128 MiB) -> 48 MiB.
    input_budget = min(vmem_cap // 2, 48 << 20)

    def align_rows(tb):
        if tb >= batch:
            return batch                       # full-axis block is always legal
        return max(row_align, (tb // row_align) * row_align)

    def align_cols(td):
        if td >= feat:
            return feat
        return max(128, (td // 128) * 128)

    if tile_rows is not None or tile_cols is not None:
        tb = batch if tile_rows is None else align_rows(int(tile_rows))
        td = feat if tile_cols is None else align_cols(int(tile_cols))
        return tb, td, vmem_cap, input_budget

    # Preferred path: full-width D blocks, rows sized so that
    # 3 inputs x 2 pipeline buffers x tb x D x itemsize <= input_budget.
    per_row_full = 3 * 2 * feat * itemsize
    tb_full = input_budget // max(per_row_full, 1)
    if tb_full >= row_align:
        return align_rows(tb_full), feat, vmem_cap, input_budget

    # Very wide D: tile the feature axis (serial "arbitrary" reduction) instead
    # of shrinking the row tile toward the minimum / OOM-ing VMEM.
    tb = align_rows(min(batch, 8 * row_align))
    td = align_cols(input_budget // max(3 * 2 * tb * itemsize, 1))
    return tb, td, vmem_cap, input_budget


def triplet_loss(anchor, positive, negative, margin=1.0,
                 tile_rows=None, tile_cols=None):
    """Pallas TPU implementation of TripletLoss.forward. Returns a scalar."""
    assert anchor.shape == positive.shape == negative.shape
    assert anchor.ndim == 2, "expected (batch, feature) inputs"
    B, D = anchor.shape
    itemsize = jnp.dtype(anchor.dtype).itemsize

    tb, td, vmem_cap, _ = _choose_tiles(B, D, itemsize, tile_rows, tile_cols)
    grid = (pl.cdiv(B, tb), pl.cdiv(D, td))

    kernel = functools.partial(
        _triplet_loss_kernel, margin=float(margin), feat=D, block_cols=td)

    # VMEM: 3 inputs x 2 buffers + double-buffered (tb,1) output + 2 scratch + slack.
    vmem_need = 3 * 2 * tb * td * itemsize + 2 * tb * 4 + 2 * tb * 4 + (4 << 20)
    vmem_limit = int(min(max(vmem_need, 16 << 20), vmem_cap))

    cost = pl.CostEstimate(
        flops=int(7 * B * D),
        transcendentals=int(2 * B),
        bytes_accessed=int(3 * B * D * itemsize + B * 4),
    )

    in_spec = pl.BlockSpec((tb, td), lambda i, k: (i, k))
    per_row_loss = pl.pallas_call(
        kernel,
        out_shape=jax.ShapeDtypeStruct((B, 1), jnp.float32),
        grid=grid,
        in_specs=[in_spec, in_spec, in_spec],
        out_specs=pl.BlockSpec((tb, 1), lambda i, k: (i, 0)),
        scratch_shapes=[pltpu.VMEM((tb, 1), jnp.float32),
                        pltpu.VMEM((tb, 1), jnp.float32)],
        compiler_params=pltpu.CompilerParams(
            dimension_semantics=("parallel", "arbitrary"),
            vmem_limit_bytes=vmem_limit,
        ),
        cost_estimate=cost,
    )(anchor, positive, negative)

    # Mean over the true batch size (output is exactly (B, 1)).
    return jnp.mean(per_row_loss)


def _reference(anchor, positive, negative, margin):
    a = anchor.astype(jnp.float32)
    p = positive.astype(jnp.float32)
    n = negative.astype(jnp.float32)
    dp = jnp.linalg.norm(a - p, axis=1)
    dn = jnp.linalg.norm(a - n, axis=1)
    return jnp.mean(jnp.maximum(dp - dn + margin, 0.0))


if __name__ == "__main__":
    key = jax.random.PRNGKey(0)
    keys = jax.random.split(key, 12)

    # Case 1: small batch, auto tiling -> single full-array block (grid (1,1)).
    B1, D1 = 12, 128
    a1 = jax.random.normal(keys[0], (B1, D1), dtype=jnp.float32)
    p1 = jax.random.normal(keys[1], (B1, D1), dtype=jnp.float32)
    n1 = jax.random.normal(keys[2], (B1, D1), dtype=jnp.float32)
    loss1 = triplet_loss(a1, p1, n1, margin=1.0)
    jax.block_until_ready(loss1)
    ref1 = _reference(a1, p1, n1, 1.0)
    assert jnp.allclose(loss1, ref1, rtol=1e-5, atol=1e-5), (loss1, ref1)

    # Case 2: multi-block batch grid with a partial last block (40 rows, 16-row tiles).
    B2, D2 = 40, 128
    a2 = jax.random.normal(keys[3], (B2, D2), dtype=jnp.float32)
    p2 = jax.random.normal(keys[4], (B2, D2), dtype=jnp.float32)
    n2 = jax.random.normal(keys[5], (B2, D2), dtype=jnp.float32)
    loss2 = triplet_loss(a2, p2, n2, margin=1.0, tile_rows=16)
    jax.block_until_ready(loss2)
    ref2 = _reference(a2, p2, n2, 1.0)
    assert jnp.allclose(loss2, ref2, rtol=1e-5, atol=1e-5), (loss2, ref2)

    # Case 3: feature-axis reduction path with a masked partial D block
    # (D=200, 128-wide column tiles -> 2 k-steps, second one masked).
    B3, D3 = 24, 200
    a3 = jax.random.normal(keys[6], (B3, D3), dtype=jnp.float32)
    p3 = jax.random.normal(keys[7], (B3, D3), dtype=jnp.float32)
    n3 = jax.random.normal(keys[8], (B3, D3), dtype=jnp.float32)
    loss3 = triplet_loss(a3, p3, n3, margin=1.0, tile_rows=16, tile_cols=128)
    jax.block_until_ready(loss3)
    ref3 = _reference(a3, p3, n3, 1.0)
    assert jnp.allclose(loss3, ref3, rtol=1e-5, atol=1e-5), (loss3, ref3)

    # Case 4: bf16 inputs (row tile aligned to 16 sublanes), f32 accumulation.
    B4, D4 = 32, 256
    a4 = jax.random.normal(keys[9], (B4, D4), dtype=jnp.bfloat16)
    p4 = jax.random.normal(keys[10], (B4, D4), dtype=jnp.bfloat16)
    n4 = jax.random.normal(keys[11], (B4, D4), dtype=jnp.bfloat16)
    loss4 = triplet_loss(a4, p4, n4, margin=1.0, tile_rows=16)
    jax.block_until_ready(loss4)
    ref4 = _reference(a4, p4, n4, 1.0)
    assert jnp.allclose(loss4, ref4, rtol=1e-3, atol=1e-3), (loss4, ref4)

    print("KERNEL_OK")
</pallas_src>

<mosaic_0001>
module attributes {stable_mosaic.version = 11 : i64} {
  func.func @_triplet_loss_kernel(%arg0: i32, %arg1: i32, %arg2: memref<12x128xf32, #tpu.memory_space<vmem>>, %arg3: memref<12x128xf32, #tpu.memory_space<vmem>>, %arg4: memref<12x128xf32, #tpu.memory_space<vmem>>, %arg5: memref<12x1xf32, #tpu.memory_space<vmem>>, %arg6: memref<12x1xf32, #tpu.memory_space<vmem>>, %arg7: memref<12x1xf32, #tpu.memory_space<vmem>>) attributes {dimension_semantics = [#tpu.dimension_semantics<parallel>, #tpu.dimension_semantics<arbitrary>], iteration_bounds = array<i64: 1, 1>, scalar_prefetch = 0 : i64, scratch_operands = 2 : i64, tpu.core_type = #tpu.core_type<tc>, window_params = [{transform_indices = @transform_0, window_bounds = array<i64: 12, 128>}, {transform_indices = @transform_1, window_bounds = array<i64: 12, 128>}, {transform_indices = @transform_2, window_bounds = array<i64: 12, 128>}, {transform_indices = @transform_3, window_bounds = array<i64: 12, 1>}]} {
    %c0 = arith.constant 0 : index
    %c0_0 = arith.constant 0 : index
    %0 = vector.load %arg2[%c0, %c0_0] : memref<12x128xf32, #tpu.memory_space<vmem>>, vector<12x128xf32>
    %c0_1 = arith.constant 0 : index
    %c0_2 = arith.constant 0 : index
    %1 = vector.load %arg3[%c0_1, %c0_2] : memref<12x128xf32, #tpu.memory_space<vmem>>, vector<12x128xf32>
    %c0_3 = arith.constant 0 : index
    %c0_4 = arith.constant 0 : index
    %2 = vector.load %arg4[%c0_3, %c0_4] : memref<12x128xf32, #tpu.memory_space<vmem>>, vector<12x128xf32>
    %3 = arith.subf %0, %1 : vector<12x128xf32>
    %4 = arith.subf %0, %2 : vector<12x128xf32>
    %c0_i32 = arith.constant 0 : i32
    %5 = arith.cmpi eq, %arg1, %c0_i32 : i32
    %6 = arith.extui %5 : i1 to i32
    %c0_i32_5 = arith.constant 0 : i32
    %7 = arith.cmpi ne, %6, %c0_i32_5 : i32
    scf.if %7 {
      %cst_17 = arith.constant 0.000000e+00 : f32
      %23 = vector.broadcast %cst_17 : f32 to vector<12x1xf32>
      %c0_18 = arith.constant 0 : index
      %c0_19 = arith.constant 0 : index
      %24 = vector.load %arg6[%c0_18, %c0_19] : memref<12x1xf32, #tpu.memory_space<vmem>>, vector<12x1xf32>
      tpu.vector_store %arg6[%c0_18, %c0_19], %23 {strides = array<i32>} : memref<12x1xf32, #tpu.memory_space<vmem>>, vector<12x1xf32>,
      %cst_20 = arith.constant 0.000000e+00 : f32
      %25 = vector.broadcast %cst_20 : f32 to vector<12x1xf32>
      %c0_21 = arith.constant 0 : index
      %c0_22 = arith.constant 0 : index
      %26 = vector.load %arg7[%c0_21, %c0_22] : memref<12x1xf32, #tpu.memory_space<vmem>>, vector<12x1xf32>
      tpu.vector_store %arg7[%c0_21, %c0_22], %25 {strides = array<i32>} : memref<12x1xf32, #tpu.memory_space<vmem>>, vector<12x1xf32>,
    } else {
    }
    %c0_6 = arith.constant 0 : index
    %c0_7 = arith.constant 0 : index
    %8 = vector.load %arg6[%c0_6, %c0_7] : memref<12x1xf32, #tpu.memory_space<vmem>>, vector<12x1xf32>
    %9 = arith.mulf %3, %3 : vector<12x128xf32>
    %cst = arith.constant dense<0.000000e+00> : vector<12xf32>
    %10 = vector.multi_reduction <add>, %9, %cst [1] : vector<12x128xf32> to vector<12xf32>
    %11 = vector.shape_cast %10 : vector<12xf32> to vector<12x1xf32>
    %12 = arith.addf %8, %11 : vector<12x1xf32>
    %c0_8 = arith.constant 0 : index
    %c0_9 = arith.constant 0 : index
    %13 = vector.load %arg6[%c0_8, %c0_9] : memref<12x1xf32, #tpu.memory_space<vmem>>, vector<12x1xf32>
    tpu.vector_store %arg6[%c0_8, %c0_9], %12 {strides = array<i32>} : memref<12x1xf32, #tpu.memory_space<vmem>>, vector<12x1xf32>,
    %c0_10 = arith.constant 0 : index
    %c0_11 = arith.constant 0 : index
    %14 = vector.load %arg7[%c0_10, %c0_11] : memref<12x1xf32, #tpu.memory_space<vmem>>, vector<12x1xf32>
    %15 = arith.mulf %4, %4 : vector<12x128xf32>
    %cst_12 = arith.constant dense<0.000000e+00> : vector<12xf32>
    %16 = vector.multi_reduction <add>, %15, %cst_12 [1] : vector<12x128xf32> to vector<12xf32>
    %17 = vector.shape_cast %16 : vector<12xf32> to vector<12x1xf32>
    %18 = arith.addf %14, %17 : vector<12x1xf32>
    %c0_13 = arith.constant 0 : index
    %c0_14 = arith.constant 0 : index
    %19 = vector.load %arg7[%c0_13, %c0_14] : memref<12x1xf32, #tpu.memory_space<vmem>>, vector<12x1xf32>
    tpu.vector_store %arg7[%c0_13, %c0_14], %18 {strides = array<i32>} : memref<12x1xf32, #tpu.memory_space<vmem>>, vector<12x1xf32>,
    %c0_i32_15 = arith.constant 0 : i32
    %20 = arith.cmpi eq, %arg1, %c0_i32_15 : i32
    %21 = arith.extui %20 : i1 to i32
    %c0_i32_16 = arith.constant 0 : i32
    %22 = arith.cmpi ne, %21, %c0_i32_16 : i32
    scf.if %22 {
      %c0_17 = arith.constant 0 : index
      %c0_18 = arith.constant 0 : index
      %23 = vector.load %arg6[%c0_17, %c0_18] : memref<12x1xf32, #tpu.memory_space<vmem>>, vector<12x1xf32>
      %24 = math.sqrt %23 : vector<12x1xf32>
      %c0_19 = arith.constant 0 : index
      %c0_20 = arith.constant 0 : index
      %25 = vector.load %arg7[%c0_19, %c0_20] : memref<12x1xf32, #tpu.memory_space<vmem>>, vector<12x1xf32>
      %26 = math.sqrt %25 : vector<12x1xf32>
      %27 = arith.subf %24, %26 : vector<12x1xf32>
      %cst_21 = arith.constant 1.000000e+00 : f32
      %28 = vector.broadcast %cst_21 : f32 to vector<12x1xf32>
      %29 = arith.addf %27, %28 : vector<12x1xf32>
      %cst_22 = arith.constant 0.000000e+00 : f32
      %30 = vector.broadcast %cst_22 : f32 to vector<12x1xf32>
      %31 = arith.maximumf %29, %30 : vector<12x1xf32>
      %c0_23 = arith.constant 0 : index
      %c0_24 = arith.constant 0 : index
      %32 = vector.load %arg5[%c0_23, %c0_24] : memref<12x1xf32, #tpu.memory_space<vmem>>, vector<12x1xf32>
      tpu.vector_store %arg5[%c0_23, %c0_24], %31 {strides = array<i32>} : memref<12x1xf32, #tpu.memory_space<vmem>>, vector<12x1xf32>,
    } else {
    }
    return
  }
  func.func @transform_0(%arg0: i32, %arg1: i32) -> (i32, i32) {
    %c0_i32 = arith.constant 0 : i32
    return %arg0, %arg1 : i32, i32
  }
  func.func @transform_1(%arg0: i32, %arg1: i32) -> (i32, i32) {
    %c0_i32 = arith.constant 0 : i32
    return %arg0, %arg1 : i32, i32
  }
  func.func @transform_2(%arg0: i32, %arg1: i32) -> (i32, i32) {
    %c0_i32 = arith.constant 0 : i32
    return %arg0, %arg1 : i32, i32
  }
  func.func @transform_3(%arg0: i32, %arg1: i32) -> (i32, i32) {
    %c0_i32 = arith.constant 0 : i32
    %c0_i32_0 = arith.constant 0 : i32
    return %arg0, %c0_i32 : i32, i32
  }
}

</mosaic_0001>

<llo_original>
// kernel: tpu_custom_call.1
$region0: #{tpu_custom_call.1}
  #allocation0 [shape = 'u32[]', space=smem, size = 0x4, offset = 0x4, fixed_abs, tag = 'smem constant byte address 0x4 - core index']
  #allocation1 [shape = 'u32[72,128]{1,0:T(1,128)}', space=vmem, size = 0x9000, scoped, tag = 'internal scratch']
  #allocation2 [shape = 'f32[12,1]{1,0:T(8,128)}', space=vmem, size = 0x2000, scoped, tag = 'scratch operand']
  #allocation3 [shape = 'f32[12,1]{1,0:T(8,128)}', space=vmem, size = 0x2000, scoped, tag = 'scratch operand']
  %s0 = inlined_call_operand.hbm [shape: f32[12,128], index: 0, kind: input, shape index: {}]
  %s1 = inlined_call_operand.hbm [shape: f32[12,128], index: 1, kind: input, shape index: {}]
  %s2 = inlined_call_operand.hbm [shape: f32[12,128], index: 2, kind: input, shape index: {}]
  %s3 = inlined_call_operand.vmem [shape: f32[12,1], index: 3, kind: output, shape index: {}]
  %s4 = sld [smem:[#allocation0]]
  $region42: #{tpu_custom_call.1} parent=0
    _
  %s6 = ssub.s32 1, %s4
  %s7 = scalar_select 0, %s6, %s4
  $region1: #{tpu_custom_call.1} parent=0
    #allocation4 [shape = 'u8[8192]{0}', space=vmem, size = 0x2000, scoped, tag = 'input window, operand 0, single buffered']
    #allocation5 [shape = 's32[1]{0}', space=sflag, size = 0x4, scoped, tag = 'scoped memory for tpu_custom_call.1']
    #allocation6 [shape = 'u8[8192]{0}', space=vmem, size = 0x2000, scoped, tag = 'input window, operand 1, single buffered']
    #allocation7 [shape = 's32[1]{0}', space=sflag, size = 0x4, scoped, tag = 'scoped memory for tpu_custom_call.1']
    #allocation8 [shape = 'u8[8192]{0}', space=vmem, size = 0x2000, scoped, tag = 'input window, operand 2, single buffered']
    %8 = vsyncpa [#allocation5], 0
    %9 = vsyncpa [#allocation7], 0
    // Predicated region
    $region2: #{tpu_custom_call.1} parent=1 // pred_check
      _
    $region3: #{tpu_custom_call.1} parent=1 // pred_check_branch
      %11 = sbr.rel (0) target = $region5
    $region4: #{tpu_custom_call.1} parent=1 // pred_region
      %13 = vsyncadd [#allocation5], 0
      %s14 = sshll.u32 %s0, 4
      %s15 = int_to_ptr.hbm [resolvable:$true] %s14
      %s16 = sshll.u32 [#allocation4], 4
      %s17 = int_to_ptr.vmem [resolvable:$true] %s16
      %22 = dma.hbm_to_vmem [thread:$0]  %s15, 256, %s17, [#allocation5], 128, 128, 8
    $region5: #{tpu_custom_call.1} parent=1 // pred_fallthru
      _
    // Predicated region
    $region6: #{tpu_custom_call.1} parent=1 // pred_check
      _
    $region7: #{tpu_custom_call.1} parent=1 // pred_check_branch
      %24 = sbr.rel (0) target = $region9
    $region8: #{tpu_custom_call.1} parent=1 // pred_region
      %26 = vsyncadd [#allocation7], 0
      %s27 = sshll.u32 %s1, 4
      %s28 = int_to_ptr.hbm [resolvable:$true] %s27
      %s29 = sshll.u32 [#allocation6], 4
      %s30 = int_to_ptr.vmem [resolvable:$true] %s29
      %35 = dma.hbm_to_vmem [thread:$0]  %s28, 256, %s30, [#allocation7], 128, 128, 8
    $region9: #{tpu_custom_call.1} parent=1 // pred_fallthru
      _
    // Predicated region
    $region10: #{tpu_custom_call.1} parent=1 // pred_check
      _
    $region11: #{tpu_custom_call.1} parent=1 // pred_check_branch
      %37 = sbr.rel (0) target = $region13
    $region12: #{tpu_custom_call.1} parent=1 // pred_region
      %39 = vsyncadd [#allocation7], 0
      %s40 = sshll.u32 %s2, 4
      %s41 = int_to_ptr.hbm [resolvable:$true] %s40
      %s42 = sshll.u32 [#allocation8], 4
      %s43 = int_to_ptr.vmem [resolvable:$true] %s42
      %48 = dma.hbm_to_vmem [thread:$0]  %s41, 256, %s43, [#allocation7], 128, 128, 8
    $region13: #{tpu_custom_call.1} parent=1 // pred_fallthru
      _
    // Predicated region
    $region14: #{tpu_custom_call.1} parent=1 // pred_check
      _
    $region15: #{tpu_custom_call.1} parent=1 // pred_check_branch
      %50 = sbr.rel (0) target = $region17
    $region16: #{tpu_custom_call.1} parent=1 // pred_region
      %52 = dma.done [#allocation5], 256
    $region17: #{tpu_custom_call.1} parent=1 // pred_fallthru
      _
    // Predicated region
    $region18: #{tpu_custom_call.1} parent=1 // pred_check
      _
    $region19: #{tpu_custom_call.1} parent=1 // pred_check_branch
      %54 = sbr.rel (0) target = $region21
    $region20: #{tpu_custom_call.1} parent=1 // pred_region
      %56 = dma.done [#allocation7], 256
    $region21: #{tpu_custom_call.1} parent=1 // pred_fallthru
      _
    // Predicated region
    $region22: #{tpu_custom_call.1} parent=1 // pred_check
      _
    $region23: #{tpu_custom_call.1} parent=1 // pred_check_branch
      %58 = sbr.rel (0) target = $region25
    $region24: #{tpu_custom_call.1} parent=1 // pred_region
      %60 = dma.done [#allocation7], 256
    $region25: #{tpu_custom_call.1} parent=1 // pred_fallthru
      _
    %v61 = vld [vmem:[#allocation4] sm:$0xff]
    %v62 = vld [vmem:[#allocation4 + $0x8] sm:$0xf]
    %v63 = vld [vmem:[#allocation6] sm:$0xff]
    %v64 = vld [vmem:[#allocation6 + $0x8] sm:$0xf]
    %v65 = vld [vmem:[#allocation8] sm:$0xff]
    %v66 = vld [vmem:[#allocation8 + $0x8] sm:$0xf]
    %v67 = vsub.f32 %v61, %v63
    %v68 = vsub.f32 %v62, %v64
    %v69 = vsub.f32 %v61, %v65
    %v70 = vsub.f32 %v62, %v66
    %p71 = scmp.eq.s32.totalorder 0, 0
    // Predicated region
    $region26: #{tpu_custom_call.1} parent=1 // pred_check
      %p72 = pneg %p71
    $region27: #{tpu_custom_call.1} parent=1 // pred_check_branch
      %74 = sbr.rel (%p72) target = $region29
    $region28: #{tpu_custom_call.1} parent=1 // pred_region
      %vm75 = vcmask 7168
      %76 = vst.msk [vmem:[#allocation2] sm:$0xff] %vm75, 0.0
      %vm77 = vcmask 3072
      %78 = vst.msk [vmem:[#allocation2 + $0x8] sm:$0xf] %vm77, 0.0
      %79 = vst.msk [vmem:[#allocation3] sm:$0xff] %vm75, 0.0
      %80 = vst.msk [vmem:[#allocation3 + $0x8] sm:$0xf] %vm77, 0.0
    $region29: #{tpu_custom_call.1} parent=1 // pred_fallthru
      _
    %v81 = vld [vmem:[#allocation2] sm:$0xff]
    %v82 = vld [vmem:[#allocation2 + $0x8] sm:$0xf]
    %v83 = vmul.f32 %v67, %v67
    %v84 = vmul.f32 %v68, %v68
    %85 = vadd.xlane.f32.xlu0 %v83
    %v86 = vpop.xlane.xlu0 %85
    %vm87 = vcmask 1043456
    %v88 = vsel %vm87, %v84, 0.0
    %89 = vadd.xlane.f32.xlu0 %v88
    %v90 = vpop.xlane.xlu0 %89
    %v91 = vadd.f32 %v81, %v86
    %v92 = vadd.f32 %v82, %v90
    %vm93 = vcmask 7168
    %94 = vst.msk [vmem:[#allocation2] sm:$0xff] %vm93, %v91
    %vm95 = vcmask 3072
    %96 = vst.msk [vmem:[#allocation2 + $0x8] sm:$0xf] %vm95, %v92
    %v97 = vld [vmem:[#allocation3] sm:$0xff]
    %v98 = vld [vmem:[#allocation3 + $0x8] sm:$0xf]
    %v99 = vmul.f32 %v69, %v69
    %v100 = vmul.f32 %v70, %v70
    %101 = vadd.xlane.f32.xlu0 %v99
    %v102 = vpop.xlane.xlu0 %101
    %v103 = vsel %vm87, %v100, 0.0
    %104 = vadd.xlane.f32.xlu0 %v103
    %v105 = vpop.xlane.xlu0 %104
    %v106 = vadd.f32 %v97, %v102
    %v107 = vadd.f32 %v98, %v105
    %108 = vst.msk [vmem:[#allocation3] sm:$0xff] %vm93, %v106
    %109 = vst.msk [vmem:[#allocation3 + $0x8] sm:$0xf] %vm95, %v107
    // Predicated region
    $region30: #{tpu_custom_call.1} parent=1 // pred_check
      %p110 = pneg %p71
    $region31: #{tpu_custom_call.1} parent=1 // pred_check_branch
      %112 = sbr.rel (%p110) target = $region33
    $region32: #{tpu_custom_call.1} parent=1 // pred_region
      %v113 = vld [vmem:[#allocation2] sm:$0xff]
      %v114 = vld [vmem:[#allocation2 + $0x8] sm:$0xf]
      %v115 = vrsqrt.pop %v113
      %v116 = vmul.f32 %v115, %v113
      %v117 = vmul.f32 %v116, %v115
      %v118 = vmul.f32 0.5, %v117
      %v119 = vsub.f32 1.5, %v118
      %v120 = vmul.f32 %v115, %v119
      %v121 = vmul.f32 %v113, %v120
      %vm122 = vcmp.eq.f32.partialorder %v113, inf
      %v123 = vsel %vm122, %v113, %v121
      %vm124 = vcmp.eq.f32.partialorder %v113, 0.0
      %v125 = vand.u32 %v113, 2147483648
      %v126 = vsel %vm124, %v125, %v123
      %v127 = vrsqrt.pop %v114
      %v128 = vmul.f32 %v127, %v114
      %v129 = vmul.f32 %v128, %v127
      %v130 = vmul.f32 0.5, %v129
      %v131 = vsub.f32 1.5, %v130
      %v132 = vmul.f32 %v127, %v131
      %v133 = vmul.f32 %v114, %v132
      %vm134 = vcmp.eq.f32.partialorder %v114, inf
      %v135 = vsel %vm134, %v114, %v133
      %vm136 = vcmp.eq.f32.partialorder %v114, 0.0
      %v137 = vand.u32 %v114, 2147483648
      %v138 = vsel %vm136, %v137, %v135
      %v139 = vld [vmem:[#allocation3] sm:$0xff]
      %v140 = vld [vmem:[#allocation3 + $0x8] sm:$0xf]
      %v141 = vrsqrt.pop %v139
      %v142 = vmul.f32 %v141, %v139
      %v143 = vmul.f32 %v142, %v141
      %v144 = vmul.f32 0.5, %v143
      %v145 = vsub.f32 1.5, %v144
      %v146 = vmul.f32 %v141, %v145
      %v147 = vmul.f32 %v139, %v146
      %vm148 = vcmp.eq.f32.partialorder %v139, inf
      %v149 = vsel %vm148, %v139, %v147
      %vm150 = vcmp.eq.f32.partialorder %v139, 0.0
      %v151 = vand.u32 %v139, 2147483648
      %v152 = vsel %vm150, %v151, %v149
      %v153 = vrsqrt.pop %v140
      %v154 = vmul.f32 %v153, %v140
      %v155 = vmul.f32 %v154, %v153
      %v156 = vmul.f32 0.5, %v155
      %v157 = vsub.f32 1.5, %v156
      %v158 = vmul.f32 %v153, %v157
      %v159 = vmul.f32 %v140, %v158
      %vm160 = vcmp.eq.f32.partialorder %v140, inf
      %v161 = vsel %vm160, %v140, %v159
      %vm162 = vcmp.eq.f32.partialorder %v140, 0.0
      %v163 = vand.u32 %v140, 2147483648
      %v164 = vsel %vm162, %v163, %v161
      %v165 = vsub.f32 %v126, %v152
      %v166 = vsub.f32 %v138, %v164
      %v167 = vadd.f32 %v165, 1.0
      %v168 = vadd.f32 %v166, 1.0
      %v169 = vmax.f32 %v167, 0.0
      %v170 = vmax.f32 %v168, 0.0
      %171 = vst.msk [vmem:[%s3] sm:$0xff] %vm93, %v169
      %172 = vst.msk [vmem:[%s3 + $0x8] sm:$0xf] %vm95, %v170
    $region33: #{tpu_custom_call.1} parent=1 // pred_fallthru
      _
    // Predicated region
    $region34: #{tpu_custom_call.1} parent=1 // pred_check
      _
    $region35: #{tpu_custom_call.1} parent=1 // pred_check_branch
      %174 = sbr.rel (0) target = $region37
    $region36: #{tpu_custom_call.1} parent=1 // pred_region
      _
    $region37: #{tpu_custom_call.1} parent=1 // pred_fallthru
      _
    // Predicated region
    $region38: #{tpu_custom_call.1} parent=1 // pred_check
      _
    $region39: #{tpu_custom_call.1} parent=1 // pred_check_branch
      %176 = sbr.rel (0) target = $region41
    $region40: #{tpu_custom_call.1} parent=1 // pred_region
      _
    $region41: #{tpu_custom_call.1} parent=1 // pred_fallthru
      _
    %177 = vsyncpa [#allocation5], 1
    %178 = vsyncpa [#allocation7], 1

</llo_original>
